<compile_context>
chip_gen: v7x
topology: tpu7x:2x2x1
jax: 0.10.0
libtpu: 0.0.40
codegen_flags: <defaults>
</compile_context>

<pallas_src>
import functools

import jax
import jax.numpy as jnp
from jax import lax
from jax.experimental import pallas as pl
from jax.experimental.pallas import tpu as pltpu


def center_loss_kernel(x_ref, labels_ref, centers_ref, loss_ref, c_aug_ref, *,
                       batch_size):
    """One grid step: a tile of `block_b` rows of x/labels; centers resident."""
    i = pl.program_id(0)
    f32 = jnp.float32

    @pl.when(i == 0)
    def _init():
        loss_ref[...] = jnp.zeros_like(loss_ref)
        # Build the augmented centers matrix once: [-2c | 1 | c2], (nc, F+2).
        c = centers_ref[...].astype(f32)
        nc = c.shape[0]
        c2 = jnp.sum(c * c, axis=1, keepdims=True)                    # (nc, 1)
        c_aug_ref[...] = jnp.concatenate(
            [-2.0 * c, jnp.ones((nc, 1), f32), c2], axis=1)

    x = x_ref[...].astype(f32)          # (tb, F)
    labels = labels_ref[...]            # (tb, 1) int32
    tb = x.shape[0]
    nc = c_aug_ref.shape[0]

    # Fused distance matrix in a single MXU call:
    #   distmat[i,j] = -2 * x_i.c_j + ||x_i||^2 + ||c_j||^2
    x2 = jnp.sum(x * x, axis=1, keepdims=True)                        # (tb, 1)
    x_aug = jnp.concatenate([x, x2, jnp.ones((tb, 1), f32)], axis=1)  # (tb, F+2)
    distmat = lax.dot_general(
        x_aug, c_aug_ref[...],
        dimension_numbers=(((1,), (1,)), ((), ())),   # contract feature axes
        preferred_element_type=f32,
    )                                                                 # (tb, nc)

    # one-hot mask from labels (matches labels.eq(classes) in the reference)
    classes = lax.broadcasted_iota(jnp.int32, (tb, nc), 1)
    mask = (labels == classes).astype(f32)

    # clamp is applied to the *masked* matrix, exactly as in the reference
    # (so masked-out entries contribute 1e-12 each).
    dist = jnp.clip(distmat * mask, 1e-12, 1e12)
    loss_ref[...] = loss_ref[...] + jnp.sum(dist)

    @pl.when(i == pl.num_programs(0) - 1)
    def _finalize():
        loss_ref[...] = loss_ref[...] / batch_size


def _pick_batch_tile(batch_size, max_tile=512):
    """Largest tile <= max_tile that is a multiple of 8 and divides batch_size
    exactly (falls back to the full batch as a single block)."""
    if batch_size <= max_tile or batch_size % 8 != 0:
        return batch_size
    tb = max_tile - (max_tile % 8)
    while batch_size % tb != 0:
        tb -= 8
    return tb


def center_loss(x, labels, centers, *, block_b=None):
    """Pallas CenterLoss forward. x: (B, F), labels: (B,) int,
    centers: (num_classes, F). Returns a scalar f32 loss."""
    batch_size, feat_dim = x.shape
    num_classes = centers.shape[0]

    if block_b is None:
        block_b = _pick_batch_tile(batch_size)
    assert batch_size % block_b == 0, "batch tile must divide batch size"
    grid = (batch_size // block_b,)

    labels2d = labels.reshape(batch_size, 1).astype(jnp.int32)

    kernel = functools.partial(center_loss_kernel, batch_size=batch_size)

    loss = pl.pallas_call(
        kernel,
        out_shape=jax.ShapeDtypeStruct((1, 1), jnp.float32),
        grid_spec=pltpu.PrefetchScalarGridSpec(
            num_scalar_prefetch=0,
            grid=grid,
            in_specs=[
                pl.BlockSpec((block_b, feat_dim), lambda i: (i, 0)),      # x tile
                pl.BlockSpec((block_b, 1), lambda i: (i, 0)),             # labels tile
                pl.BlockSpec((num_classes, feat_dim), lambda i: (0, 0)),  # centers (resident)
            ],
            out_specs=pl.BlockSpec((1, 1), lambda i: (0, 0)),             # scalar accumulator
            scratch_shapes=[
                pltpu.VMEM((num_classes, feat_dim + 2), jnp.float32),     # augmented centers
            ],
        ),
        compiler_params=pltpu.CompilerParams(
            dimension_semantics=("arbitrary",),  # reduction into shared output
        ),
    )(x, labels2d, centers)

    return loss[0, 0]


def _center_loss_ref(x, labels, centers):
    """Pure-JAX mirror of the PyTorch forward, for validation."""
    b = x.shape[0]
    nc = centers.shape[0]
    xf = x.astype(jnp.float32)
    cf = centers.astype(jnp.float32)
    distmat = (
        jnp.sum(xf * xf, axis=1, keepdims=True)
        + jnp.sum(cf * cf, axis=1)[None, :]
        - 2.0 * xf @ cf.T
    )
    mask = (labels[:, None] == jnp.arange(nc)[None, :]).astype(jnp.float32)
    dist = jnp.clip(distmat * mask, 1e-12, 1e12)
    return jnp.sum(dist) / b


if __name__ == "__main__":
    # small shapes consistent with the module defaults (num_classes=10, feat_dim=2)
    batch_size = 16
    num_classes = 10
    feat_dim = 2

    key = jax.random.PRNGKey(0)
    kx, kl, kc = jax.random.split(key, 3)
    x = jax.random.normal(kx, (batch_size, feat_dim), jnp.float32)
    labels = jax.random.randint(kl, (batch_size,), 0, num_classes, jnp.int32)
    centers = jax.random.normal(kc, (num_classes, feat_dim), jnp.float32)

    # block_b=8 -> grid=(2,) so the cross-tile accumulation path is exercised
    loss = center_loss(x, labels, centers, block_b=8)
    loss = jax.block_until_ready(loss)

    expected = _center_loss_ref(x, labels, centers)
    assert loss.shape == ()
    assert jnp.allclose(loss, expected, rtol=1e-5, atol=1e-6), (loss, expected)

    print("KERNEL_OK")
</pallas_src>

<mosaic_0001>
module attributes {stable_mosaic.version = 11 : i64} {
  func.func @center_loss_kernel(%arg0: i32, %arg1: memref<8x2xf32, #tpu.memory_space<vmem>>, %arg2: memref<8x1xi32, #tpu.memory_space<vmem>>, %arg3: memref<10x2xf32, #tpu.memory_space<vmem>>, %arg4: memref<1x1xf32, #tpu.memory_space<vmem>>, %arg5: memref<10x4xf32, #tpu.memory_space<vmem>>) attributes {dimension_semantics = [#tpu.dimension_semantics<arbitrary>], iteration_bounds = array<i64: 2>, scalar_prefetch = 0 : i64, scratch_operands = 1 : i64, tpu.core_type = #tpu.core_type<tc>, window_params = [{transform_indices = @transform_0, window_bounds = array<i64: 8, 2>}, {transform_indices = @transform_1, window_bounds = array<i64: 8, 1>}, {pipeline_mode = #tpu.pipeline_mode<synchronous>, transform_indices = @transform_2, window_bounds = array<i64: 10, 2>}, {pipeline_mode = #tpu.pipeline_mode<synchronous>, transform_indices = @transform_3, window_bounds = array<i64: 1, 1>}]} {
    %c0_i32 = arith.constant 0 : i32
    %0 = arith.cmpi eq, %arg0, %c0_i32 : i32
    %1 = arith.extui %0 : i1 to i32
    %c0_i32_0 = arith.constant 0 : i32
    %2 = arith.cmpi ne, %1, %c0_i32_0 : i32
    scf.if %2 {
      %cst_16 = arith.constant 0.000000e+00 : f32
      %33 = vector.broadcast %cst_16 : f32 to vector<1x1xf32>
      %c0_17 = arith.constant 0 : index
      %c0_18 = arith.constant 0 : index
      %34 = vector.load %arg4[%c0_17, %c0_18] : memref<1x1xf32, #tpu.memory_space<vmem>>, vector<1x1xf32>
      tpu.vector_store %arg4[%c0_17, %c0_18], %33 {strides = array<i32>} : memref<1x1xf32, #tpu.memory_space<vmem>>, vector<1x1xf32>,
      %c0_19 = arith.constant 0 : index
      %c0_20 = arith.constant 0 : index
      %35 = vector.load %arg3[%c0_19, %c0_20] : memref<10x2xf32, #tpu.memory_space<vmem>>, vector<10x2xf32>
      %36 = arith.mulf %35, %35 : vector<10x2xf32>
      %cst_21 = arith.constant dense<0.000000e+00> : vector<10xf32>
      %37 = vector.multi_reduction <add>, %36, %cst_21 [1] : vector<10x2xf32> to vector<10xf32>
      %38 = vector.shape_cast %37 : vector<10xf32> to vector<10x1xf32>
      %cst_22 = arith.constant -2.000000e+00 : f32
      %39 = vector.broadcast %cst_22 : f32 to vector<10x2xf32>
      %40 = arith.mulf %39, %35 : vector<10x2xf32>
      %cst_23 = arith.constant 1.000000e+00 : f32
      %41 = vector.broadcast %cst_23 : f32 to vector<10x1xf32>
      %42 = tpu.concatenate %40, %41, %38 in 1 : vector<10x2xf32>, vector<10x1xf32>, vector<10x1xf32> -> vector<10x4xf32>
      %c0_24 = arith.constant 0 : index
      %c0_25 = arith.constant 0 : index
      %43 = vector.load %arg5[%c0_24, %c0_25] : memref<10x4xf32, #tpu.memory_space<vmem>>, vector<10x4xf32>
      tpu.vector_store %arg5[%c0_24, %c0_25], %42 {strides = array<i32>} : memref<10x4xf32, #tpu.memory_space<vmem>>, vector<10x4xf32>,
    } else {
    }
    %c0 = arith.constant 0 : index
    %c0_1 = arith.constant 0 : index
    %3 = vector.load %arg1[%c0, %c0_1] : memref<8x2xf32, #tpu.memory_space<vmem>>, vector<8x2xf32>
    %c0_2 = arith.constant 0 : index
    %c0_3 = arith.constant 0 : index
    %4 = vector.load %arg2[%c0_2, %c0_3] : memref<8x1xi32, #tpu.memory_space<vmem>>, vector<8x1xi32>
    %5 = arith.mulf %3, %3 : vector<8x2xf32>
    %cst = arith.constant dense<0.000000e+00> : vector<8xf32>
    %6 = vector.multi_reduction <add>, %5, %cst [1] : vector<8x2xf32> to vector<8xf32>
    %7 = vector.shape_cast %6 : vector<8xf32> to vector<8x1xf32>
    %cst_4 = arith.constant 1.000000e+00 : f32
    %8 = vector.broadcast %cst_4 : f32 to vector<8x1xf32>
    %9 = tpu.concatenate %3, %7, %8 in 1 : vector<8x2xf32>, vector<8x1xf32>, vector<8x1xf32> -> vector<8x4xf32>
    %c0_5 = arith.constant 0 : index
    %c0_6 = arith.constant 0 : index
    %10 = vector.load %arg5[%c0_5, %c0_6] : memref<10x4xf32, #tpu.memory_space<vmem>>, vector<10x4xf32>
    %cst_7 = arith.constant dense<0.000000e+00> : vector<8x10xf32>
    %11 = tpu.matmul %9, %10, %cst_7 {dimension_numbers = #tpu.dot_dimension_numbers<[1], [1], [0], [0], [0, 0, 1, 0], [], []>} : vector<8x4xf32>, vector<10x4xf32>, vector<8x10xf32> -> vector<8x10xf32>
    %12 = tpu.iota {dimensions = array<i32: 1>} : vector<8x10xi32>
    %13 = vector.broadcast %4 : vector<8x1xi32> to vector<8x10xi32>
    %14 = arith.cmpi eq, %13, %12 : vector<8x10xi32>
    %15 = arith.extui %14 : vector<8x10xi1> to vector<8x10xi32>
    %16 = arith.sitofp %15 : vector<8x10xi32> to vector<8x10xf32>
    %17 = arith.mulf %11, %16 : vector<8x10xf32>
    %cst_8 = arith.constant 9.99999996E-13 : f32
    %cst_9 = arith.constant 9.99999995E+11 : f32
    %18 = vector.broadcast %cst_8 : f32 to vector<8x10xf32>
    %19 = arith.maximumf %18, %17 : vector<8x10xf32>
    %20 = vector.broadcast %cst_9 : f32 to vector<8x10xf32>
    %21 = arith.minimumf %20, %19 : vector<8x10xf32>
    %c0_10 = arith.constant 0 : index
    %c0_11 = arith.constant 0 : index
    %22 = vector.load %arg4[%c0_10, %c0_11] : memref<1x1xf32, #tpu.memory_space<vmem>>, vector<1x1xf32>
    %23 = vector.shape_cast %21 : vector<8x10xf32> to vector<1x8x10xf32>
    %cst_12 = arith.constant dense<0.000000e+00> : vector<1xf32>
    %24 = vector.multi_reduction <add>, %23, %cst_12 [1, 2] : vector<1x8x10xf32> to vector<1xf32>
    %25 = vector.shape_cast %24 : vector<1xf32> to vector<1x1x1xf32>
    %26 = vector.extract %25[0, 0, 0] : f32 from vector<1x1x1xf32>
    %27 = vector.broadcast %26 : f32 to vector<1x1xf32>
    %28 = arith.addf %22, %27 : vector<1x1xf32>
    %c0_13 = arith.constant 0 : index
    %c0_14 = arith.constant 0 : index
    %29 = vector.load %arg4[%c0_13, %c0_14] : memref<1x1xf32, #tpu.memory_space<vmem>>, vector<1x1xf32>
    tpu.vector_store %arg4[%c0_13, %c0_14], %28 {strides = array<i32>} : memref<1x1xf32, #tpu.memory_space<vmem>>, vector<1x1xf32>,
    %c1_i32 = arith.constant 1 : i32
    %30 = arith.cmpi eq, %arg0, %c1_i32 : i32
    %31 = arith.extui %30 : i1 to i32
    %c0_i32_15 = arith.constant 0 : i32
    %32 = arith.cmpi ne, %31, %c0_i32_15 : i32
    scf.if %32 {
      %c0_16 = arith.constant 0 : index
      %c0_17 = arith.constant 0 : index
      %33 = vector.load %arg4[%c0_16, %c0_17] : memref<1x1xf32, #tpu.memory_space<vmem>>, vector<1x1xf32>
      %cst_18 = arith.constant 1.600000e+01 : f32
      %34 = vector.broadcast %cst_18 : f32 to vector<1x1xf32>
      %35 = arith.divf %33, %34 : vector<1x1xf32>
      %c0_19 = arith.constant 0 : index
      %c0_20 = arith.constant 0 : index
      %36 = vector.load %arg4[%c0_19, %c0_20] : memref<1x1xf32, #tpu.memory_space<vmem>>, vector<1x1xf32>
      tpu.vector_store %arg4[%c0_19, %c0_20], %35 {strides = array<i32>} : memref<1x1xf32, #tpu.memory_space<vmem>>, vector<1x1xf32>,
    } else {
    }
    return
  }
  func.func @transform_0(%arg0: i32) -> (i32, i32) {
    %c0_i32 = arith.constant 0 : i32
    %c0_i32_0 = arith.constant 0 : i32
    return %arg0, %c0_i32 : i32, i32
  }
  func.func @transform_1(%arg0: i32) -> (i32, i32) {
    %c0_i32 = arith.constant 0 : i32
    %c0_i32_0 = arith.constant 0 : i32
    return %arg0, %c0_i32 : i32, i32
  }
  func.func @transform_2(%arg0: i32) -> (i32, i32) {
    %c0_i32 = arith.constant 0 : i32
    %c0_i32_0 = arith.constant 0 : i32
    %c0_i32_1 = arith.constant 0 : i32
    return %c0_i32, %c0_i32_0 : i32, i32
  }
  func.func @transform_3(%arg0: i32) -> (i32, i32) {
    %c0_i32 = arith.constant 0 : i32
    %c0_i32_0 = arith.constant 0 : i32
    %c0_i32_1 = arith.constant 0 : i32
    return %c0_i32, %c0_i32_0 : i32, i32
  }
}

</mosaic_0001>

<llo_original>
// kernel: tpu_custom_call.1
$region0: #{tpu_custom_call.1}
  #allocation0 [shape = 'u32[]', space=smem, size = 0x4, offset = 0x4, fixed_abs, tag = 'smem constant byte address 0x4 - core index']
  #allocation1 [shape = 'u32[144,128]{1,0:T(1,128)}', space=vmem, size = 0x12000, scoped, tag = 'internal scratch']
  #allocation2 [shape = 'f32[10,4]{1,0:T(8,128)}', space=vmem, size = 0x2000, scoped, tag = 'scratch operand']
  %s0 = inlined_call_operand.vmem [shape: f32[16,2], index: 0, kind: input, shape index: {}]
  %s1 = inlined_call_operand.vmem [shape: s32[16,1], index: 1, kind: input, shape index: {}]
  %s2 = inlined_call_operand.vmem [shape: f32[10,2], index: 2, kind: input, shape index: {}]
  %s3 = inlined_call_operand.hbm [shape: f32[1,1], index: 3, kind: output, shape index: {}]
  %s4 = sld [smem:[#allocation0]]
  $region53: #{tpu_custom_call.1} parent=0
    _
  %s6 = ssub.s32 1, %s4
  %s7 = scalar_select 0, %s6, %s4
  $region1: #{tpu_custom_call.1} parent=0
    #allocation3 [shape = 'u8[512]{0}', space=vmem, size = 0x400, scoped, tag = 'output window, operand 0, single buffered']
    #allocation4 [shape = 's32[2]{0}', space=sflag, size = 0x8, scoped, tag = 'scoped memory for tpu_custom_call.1']
    %8 = vsyncpa [#allocation4], 0
    loop: start=0, step=1, limit=4
    $region2: #{tpu_custom_call.1} parent=1 // loop_pre_header
      _
    $region3: #{tpu_custom_call.1} parent=1 // loop_header
      %s10 = sphi 0, %s14
      %p11 = scmp.ge.s32.totalorder %s10, 4
      %s20 = sphi 0, %s22
      %s23 = sphi 0, %s20
      %s24 = sphi 0, %s23
      %s40 = sphi 0, %s24
      %s46 = sphi 0, %s48
      %s49 = sphi 0, %s46
      %s50 = sphi 0, %s49
      %s66 = sphi 0, %s50
      %s70 = sphi 0, %s70
      %s72 = sphi 0, %s70
      %s73 = sphi 0, %s72
      %s87 = sphi 0, %s73
      %s91 = sphi 0, %s91
      %s93 = sphi 0, %s91
      %s94 = sphi 0, %s93
      %s108 = sphi 0, %s94
    $region4: #{tpu_custom_call.1} parent=1 // loop_header_branch
      %13 = sbr.rel (%p11) target = $region8
    $region5: #{tpu_custom_call.1} parent=1 // loop_body
      %s15 = ssub.s32 %s10, 1
      %s16 = ssub.s32 %s10, 2
      %s17 = sadd.s32 %s10, 1
      %s18 = ssub.s32 %s10, %s17
      %p19 = scmp.eq.s32.totalorder %s18, 0
      %s21 = sadd.s32 %s20, 1
      %s22 = scalar_select %p19, %s20, %s21
      %p25 = pneg %p19
      %p26 = scmp.eq.s32.totalorder %s10, 1
      %p27 = por %p25, %p26
      %p28 = scmp.ne.s32.totalorder %s20, %s23
      %p29 = scmp.eq.s32.totalorder %s10, 0
      %p30 = por %p28, %p29
      %p31 = scmp.ne.s32.totalorder %s20, %s23
      %p32 = scmp.eq.s32.totalorder %s15, 1
      %p33 = por %p31, %p32
      %p34 = scmp.ne.s32.totalorder %s23, %s24
      %p35 = scmp.eq.s32.totalorder %s15, 0
      %p36 = por %p34, %p35
      %p37 = scmp.ne.s32.totalorder %s23, %s24
      %p38 = scmp.eq.s32.totalorder %s16, 1
      %p39 = por %p37, %p38
      %p41 = scmp.ne.s32.totalorder %s24, %s40
      %p42 = scmp.eq.s32.totalorder %s16, 0
      %p43 = por %p41, %p42
      %s44 = ssub.s32 %s10, %s17
      %p45 = scmp.eq.s32.totalorder %s44, 0
      %s47 = sadd.s32 %s46, 1
      %s48 = scalar_select %p45, %s46, %s47
      %p51 = pneg %p45
      %p52 = scmp.eq.s32.totalorder %s10, 1
      %p53 = por %p51, %p52
      %p54 = scmp.ne.s32.totalorder %s46, %s49
      %p55 = scmp.eq.s32.totalorder %s10, 0
      %p56 = por %p54, %p55
      %p57 = scmp.ne.s32.totalorder %s46, %s49
      %p58 = scmp.eq.s32.totalorder %s15, 1
      %p59 = por %p57, %p58
      %p60 = scmp.ne.s32.totalorder %s49, %s50
      %p61 = scmp.eq.s32.totalorder %s15, 0
      %p62 = por %p60, %p61
      %p63 = scmp.ne.s32.totalorder %s49, %s50
      %p64 = scmp.eq.s32.totalorder %s16, 1
      %p65 = por %p63, %p64
      %p67 = scmp.ne.s32.totalorder %s50, %s66
      %p68 = scmp.eq.s32.totalorder %s16, 0
      %p69 = por %p67, %p68
      %s71 = sadd.s32 %s70, 1
      %p74 = scmp.eq.s32.totalorder %s10, 1
      %p75 = scmp.ne.s32.totalorder %s70, %s72
      %p76 = scmp.eq.s32.totalorder %s10, 0
      %p77 = por %p75, %p76
      %p78 = scmp.ne.s32.totalorder %s70, %s72
      %p79 = scmp.eq.s32.totalorder %s15, 1
      %p80 = por %p78, %p79
      %p81 = scmp.ne.s32.totalorder %s72, %s73
      %p82 = scmp.eq.s32.totalorder %s15, 0
      %p83 = por %p81, %p82
      %p84 = scmp.ne.s32.totalorder %s72, %s73
      %p85 = scmp.eq.s32.totalorder %s16, 1
      %p86 = por %p84, %p85
      %p88 = scmp.ne.s32.totalorder %s73, %s87
      %p89 = scmp.eq.s32.totalorder %s16, 0
      %p90 = por %p88, %p89
      %s92 = sadd.s32 %s91, 1
      %p95 = scmp.eq.s32.totalorder %s10, 1
      %p96 = scmp.ne.s32.totalorder %s91, %s93
      %p97 = scmp.eq.s32.totalorder %s10, 0
      %p98 = por %p96, %p97
      %p99 = scmp.ne.s32.totalorder %s91, %s93
      %p100 = scmp.eq.s32.totalorder %s15, 1
      %p101 = por %p99, %p100
      %p102 = scmp.ne.s32.totalorder %s93, %s94
      %p103 = scmp.eq.s32.totalorder %s15, 0
      %p104 = por %p102, %p103
      %p105 = scmp.ne.s32.totalorder %s93, %s94
      %p106 = scmp.eq.s32.totalorder %s16, 1
      %p107 = por %p105, %p106
      %p109 = scmp.ne.s32.totalorder %s94, %s108
      %p110 = scmp.eq.s32.totalorder %s16, 0
      %p111 = por %p109, %p110
      %p112 = scmp.le.s32.totalorder 1, %s10
      %p113 = scmp.lt.s32.totalorder %s10, 3
      %p114 = pnand %p112, %p113
      %p115 = pneg %p114
      // Predicated region
      $region9: #{tpu_custom_call.1} parent=5 // pred_check
        _
      $region10: #{tpu_custom_call.1} parent=5 // pred_check_branch
        %117 = sbr.rel (%p114) target = $region12
      $region11: #{tpu_custom_call.1} parent=5 // pred_region
        %s118 = ssub.s32 %s10, 1
        // Predicated region
        $region13: #{tpu_custom_call.1} parent=11 // pred_check
          %p119 = pneg %p83
        $region14: #{tpu_custom_call.1} parent=11 // pred_check_branch
          %121 = sbr.rel (%p119) target = $region16
        $region15: #{tpu_custom_call.1} parent=11 // pred_region
          _
        $region16: #{tpu_custom_call.1} parent=11 // pred_fallthru
          _
      $region12: #{tpu_custom_call.1} parent=5 // pred_fallthru
        _
      %p122 = scmp.lt.s32.totalorder %s10, 2
      // Predicated region
      $region17: #{tpu_custom_call.1} parent=5 // pred_check
        %p123 = pneg %p122
      $region18: #{tpu_custom_call.1} parent=5 // pred_check_branch
        %125 = sbr.rel (%p123) target = $region20
      $region19: #{tpu_custom_call.1} parent=5 // pred_region
        // Predicated region
        $region21: #{tpu_custom_call.1} parent=19 // pred_check
          %p126 = pneg %p30
        $region22: #{tpu_custom_call.1} parent=19 // pred_check_branch
          %128 = sbr.rel (%p126) target = $region24
        $region23: #{tpu_custom_call.1} parent=19 // pred_region
          %p129 = scmp.lt.s32.totalorder %s10, 1
          %s130 = scalar_select %p129, %s10, 1
          %s131 = smul.addr %s130, 8
          %s132 = scalar_lea.vmem %s0, %s131
        $region24: #{tpu_custom_call.1} parent=19 // pred_fallthru
          _
        // Predicated region
        $region25: #{tpu_custom_call.1} parent=19 // pred_check
          %p133 = pneg %p56
        $region26: #{tpu_custom_call.1} parent=19 // pred_check_branch
          %135 = sbr.rel (%p133) target = $region28
        $region27: #{tpu_custom_call.1} parent=19 // pred_region
          %p136 = scmp.lt.s32.totalorder %s10, 1
          %s137 = scalar_select %p136, %s10, 1
          %s138 = smul.addr %s137, 8
          %s139 = scalar_lea.vmem %s1, %s138
        $region28: #{tpu_custom_call.1} parent=19 // pred_fallthru
          _
      $region20: #{tpu_custom_call.1} parent=5 // pred_fallthru
        _
      %p140 = scmp.le.s32.totalorder 1, %s10
      %p141 = scmp.lt.s32.totalorder %s10, 3
      %p142 = pnand %p140, %p141
      %p143 = pneg %p142
      // Predicated region
      $region29: #{tpu_custom_call.1} parent=5 // pred_check
        _
      $region30: #{tpu_custom_call.1} parent=5 // pred_check_branch
        %145 = sbr.rel (%p142) target = $region32
      $region31: #{tpu_custom_call.1} parent=5 // pred_region
        %s146 = ssub.s32 %s10, 1
        %p147 = scmp.lt.s32.totalorder %s15, 1
        %s148 = scalar_select %p147, %s15, 1
        %s149 = smul.addr %s148, 8
        %s150 = scalar_lea.vmem %s0, %s149
        %p151 = pneg %p36
        %p152 = pneg %p33
        %p153 = scmp.lt.s32.totalorder %s15, 1
        %s154 = scalar_select %p153, %s15, 1
        %s155 = smul.addr %s154, 8
        %s156 = scalar_lea.vmem %s1, %s155
        %p157 = pneg %p62
        %p158 = pneg %p59
        %p159 = pneg %p83
        %p160 = pneg %p80
        %p161 = pneg %p104
        %p162 = pneg %p101
        %p163 = scmp.lt.s32.totalorder %s15, 1
        %s164 = scalar_select %p163, %s15, 1
        %s165 = smul.addr %s164, 8
        %s166 = scalar_lea.vmem %s0, %s165
        %p167 = scmp.lt.s32.totalorder %s15, 1
        %s168 = scalar_select %p167, %s15, 1
        %s169 = smul.addr %s168, 8
        %s170 = scalar_lea.vmem %s1, %s169
        %p171 = scmp.eq.s32.totalorder %s15, 0
        // Predicated region
        $region33: #{tpu_custom_call.1} parent=31 // pred_check
          %p172 = pneg %p171
        $region34: #{tpu_custom_call.1} parent=31 // pred_check_branch
          %174 = sbr.rel (%p172) target = $region36
        $region35: #{tpu_custom_call.1} parent=31 // pred_region
          %vm175 = vcmask 0
          %176 = vst.msk [vmem:[#allocation3] sm:$0x1] %vm175, 0.0
          %v177 = vld [vmem:[%s2] sm:$0xff]
          %v178 = vld [vmem:[%s2 + $0x8] sm:$0x3]
          %v179 = vmul.f32 %v177, %v177
          %v180 = vmul.f32 %v178, %v178
          %vm181 = vcmask 15360
          %v182 = vsel %vm181, %v179, 0.0
          %183 = vadd.xlane.f32.xlu0 %v182
          %v184 = vpop.xlane.xlu0 %183
          %vm185 = vcmask 9216
          %v186 = vsel %vm185, %v180, 0.0
          %187 = vadd.xlane.f32.xlu0 %v186
          %v188 = vpop.xlane.xlu0 %187
          %v189 = vmul.f32 %v177, -2.0
          %v190 = vmul.f32 %v178, -2.0
          %v191 = vsel %vm181, %v189, 1.0
          %v192 = vsel %vm181, %v190, 1.0
          %vm193 = vcmask 23552
          %v194 = vsel %vm193, %v191, %v184
          %v195 = vsel %vm193, %v192, %v188
          %vm196 = vcmask 31744
          %197 = vst.msk [vmem:[#allocation2] sm:$0xff] %vm196, %v194
          %vm198 = vcmask 25600
          %199 = vst.msk [vmem:[#allocation2 + $0x8] sm:$0x3] %vm198, %v195
        $region36: #{tpu_custom_call.1} parent=31 // pred_fallthru
          _
        %v200 = vld [vmem:[%s166] sm:$0xff]
        %v201 = vld [vmem:[%s170] sm:$0xff]
        %v202 = vmul.f32 %v200, %v200
        %vm203 = vcmask 15360
        %v204 = vsel %vm203, %v202, 0.0
        %205 = vadd.xlane.f32.xlu0 %v204
        %v206 = vpop.xlane.xlu0 %205
        %v207 = vsel %vm203, %v200, %v206
        %vm208 = vcmask 23552
        %v209 = vsel %vm208, %v207, 1.0
        %v210 = vld [vmem:[#allocation2] sm:$0xff]
        %v211 = vld [vmem:[#allocation2 + $0x8] sm:$0x3]
        %vm212 = vcmask 31744
        %v214 = vsel %vm212, %v209, 0
        %v217 = vsel %vm212, %v210, 0
        %v220 = vsel %vm212, %v211, 0
        %222 = vmatprep.subr.mxu0 0.0
        %223 = vmatpush1.xpose.msra.mxu0 %v217
        %224 = vmatprep.subr.mxu0 0.0
        %225 = vmatpush1.xpose.msra.mxu0 %v220
        %226 = vmatprep.subr.mxu0 0.0
        %227 = vmatpush1.xpose.msra.mxu0 0.0
        %228 = vmatprep.subr.mxu0 0.0
        %229 = vmatpush1.xpose.msra.mxu0 0.0
        %230 = vmatprep.subr.mxu0 0.0
        %231 = vmatpush1.xpose.msra.mxu0 0.0
        %232 = vmatprep.subr.mxu0 0.0
        %233 = vmatpush1.xpose.msra.mxu0 0.0
        %234 = vmatprep.subr.mxu0 0.0
        %235 = vmatpush1.xpose.msra.mxu0 0.0
        %236 = vmatprep.subr.mxu0 0.0
        %237 = vmatpush1.xpose.msra.mxu0 0.0
        %238 = vmatprep.subr.mxu0 0.0
        %239 = vmatpush1.xpose.msra.mxu0 0.0
        %240 = vmatprep.subr.mxu0 0.0
        %241 = vmatpush1.xpose.msra.mxu0 0.0
        %242 = vmatprep.subr.mxu0 0.0
        %243 = vmatpush1.xpose.msra.mxu0 0.0
        %244 = vmatprep.subr.mxu0 0.0
        %245 = vmatpush1.xpose.msra.mxu0 0.0
        %246 = vmatprep.subr.mxu0 0.0
        %247 = vmatpush1.xpose.msra.mxu0 0.0
        %248 = vmatprep.subr.mxu0 0.0
        %249 = vmatpush1.xpose.msra.mxu0 0.0
        %250 = vmatprep.subr.mxu0 0.0
        %251 = vmatpush1.xpose.msra.mxu0 0.0
        %252 = vmatprep.subr.mxu0 0.0
        %253 = vmatpush1.xpose.msra.mxu0 0.0
        %254 = vmatprep.subr.mxu0 0.0
        %255 = vmatpush1.xpose.msra.mxu0 0.0
        %256 = vmatprep.subr.mxu0 0.0
        %257 = vmatpush1.xpose.msra.mxu0 0.0
        %258 = vmatprep.subr.mxu0 0.0
        %259 = vmatpush1.xpose.msra.mxu0 0.0
        %260 = vmatprep.subr.mxu0 0.0
        %261 = vmatpush1.xpose.msra.mxu0 0.0
        %262 = vmatprep.subr.mxu0 0.0
        %263 = vmatpush1.xpose.msra.mxu0 0.0
        %264 = vmatprep.subr.mxu0 0.0
        %265 = vmatpush1.xpose.msra.mxu0 0.0
        %266 = vmatprep.subr.mxu0 0.0
        %267 = vmatpush1.xpose.msra.mxu0 0.0
        %268 = vmatprep.subr.mxu0 0.0
        %269 = vmatpush1.xpose.msra.mxu0 0.0
        %270 = vmatprep.subr.mxu0 0.0
        %271 = vmatpush1.xpose.msra.mxu0 0.0
        %272 = vmatprep.subr.mxu0 0.0
        %273 = vmatpush1.xpose.msra.mxu0 0.0
        %274 = vmatprep.subr.mxu0 0.0
        %275 = vmatpush1.xpose.msra.mxu0 0.0
        %276 = vmatprep.subr.mxu0 0.0
        %277 = vmatpush1.xpose.msra.mxu0 0.0
        %278 = vmatprep.subr.mxu0 0.0
        %279 = vmatpush1.xpose.msra.mxu0 0.0
        %280 = vmatprep.subr.mxu0 0.0
        %281 = vmatpush1.xpose.msra.mxu0 0.0
        %282 = vmatprep.subr.mxu0 0.0
        %283 = vmatpush1.xpose.msra.mxu0 0.0
        %284 = vmatprep.subr.mxu0 0.0
        %285 = vmatpush1.xpose.msra.mxu0 0.0
        %286 = vmatprep.mubr.f32.mxu0 0.0
        %287 = vmatmul.mubr.f32.gmra.mrb[0].mxu0 %v214
        %v288 = vpop.f32.mrb[0].mxu0
        %v289 = vadd.f32 0.0, %v288
        %v290 = vpop.f32.mrb[0].mxu0
        %291 = vdwg.mxu0
        %v292 = vlaneseq
        %v293 = vand.u32 %v292, 127
        %294 = vset.pattern.permute.xlu0 0
        %295 = vperm.xlu0 %294, %v201
        %v296 = vpop.permute.xlu0 %295
        %vm297 = vcmp.eq.s32.totalorder %v296, %v293
        %v298 = vsel %vm297, 1, 0
        %v299 = vcvt.s32.f32 %v298
        %v300 = vmul.f32 %v289, %v299
        %v301 = vmax.f32 %v300, 1e-12
        %v302 = vmin.f32 %v301, 1e+12
        %v303 = vld [vmem:[#allocation3] sm:$0x1]
        %vm304 = vcmask 80896
        %v305 = vsel %vm304, %v302, 0.0
        %306 = vadd.xlane.f32.xlu0 %v305
        %v307 = vpop.xlane.xlu0 %306
        %v308 = vrot.slane %v307, 4
        %v309 = vadd.f32 %v307, %v308
        %v310 = vrot.slane %v309, 2
        %v311 = vadd.f32 %v309, %v310
        %v312 = vrot.slane %v311, 1
        %v313 = vadd.f32 %v311, %v312
        %s314 = vtos %v313
        %v315 = vstv %s314
        %v316 = vadd.f32 %v303, %v315
        %vm317 = vcmask 0
        %318 = vst.msk [vmem:[#allocation3] sm:$0x1] %vm317, %v316
        %p319 = scmp.eq.s32.totalorder %s15, 1
        // Predicated region
        $region37: #{tpu_custom_call.1} parent=31 // pred_check
          %p320 = pneg %p319
        $region38: #{tpu_custom_call.1} parent=31 // pred_check_branch
          %322 = sbr.rel (%p320) target = $region40
        $region39: #{tpu_custom_call.1} parent=31 // pred_region
          %v323 = vld [vmem:[#allocation3] sm:$0x1]
          %v324 = vrcp.pop 16.0
          %v325 = vmul.f32 %v323, %v324
          %326 = vst.msk [vmem:[#allocation3] sm:$0x1] %vm317, %v325
        $region40: #{tpu_custom_call.1} parent=31 // pred_fallthru
          _
        // Predicated region
        $region41: #{tpu_custom_call.1} parent=31 // pred_check
          %p327 = pneg %p101
        $region42: #{tpu_custom_call.1} parent=31 // pred_check_branch
          %329 = sbr.rel (%p327) target = $region44
        $region43: #{tpu_custom_call.1} parent=31 // pred_region
          %s331 = ssub.s32 16, 16
          %332 = vsyncadd [#allocation4], %s331
          %s334 = sshll.u32 [#allocation3], 4
          %s335 = int_to_ptr.vmem [resolvable:$true] %s334
          %337 = dma.vmem_to_hbm [thread:$0]  %s335, 16, %s3, [#allocation4]
        $region44: #{tpu_custom_call.1} parent=31 // pred_fallthru
          _
        // Predicated region
        $region45: #{tpu_custom_call.1} parent=31 // pred_check
          %p338 = pneg %p101
        $region46: #{tpu_custom_call.1} parent=31 // pred_check_branch
          %340 = sbr.rel (%p338) target = $region48
        $region47: #{tpu_custom_call.1} parent=31 // pred_region
          %341 = dma.done [#allocation4], 16
        $region48: #{tpu_custom_call.1} parent=31 // pred_fallthru
          _
      $region32: #{tpu_custom_call.1} parent=5 // pred_fallthru
        _
      %p342 = scmp.le.s32.totalorder 2, %s10
      // Predicated region
      $region49: #{tpu_custom_call.1} parent=5 // pred_check
        %p343 = pneg %p342
      $region50: #{tpu_custom_call.1} parent=5 // pred_check_branch
        %345 = sbr.rel (%p343) target = $region52
      $region51: #{tpu_custom_call.1} parent=5 // pred_region
        %s346 = ssub.s32 %s10, 2
      $region52: #{tpu_custom_call.1} parent=5 // pred_fallthru
        _
    $region6: #{tpu_custom_call.1} parent=1 // loop_footer
      %s14 = sadd.s32 1, %s10
    $region7: #{tpu_custom_call.1} parent=1 // loop_footer_branch
      %9 = sbr.rel target = $region3
    $region8: #{tpu_custom_call.1} parent=1 // loop_exit
      _
    %347 = vsyncpa [#allocation4], 1
    %s348 = scalar_lea.sflag [#allocation4], 1
    %349 = vsyncpa %s348, 1

</llo_original>
